<compile_context>
chip_gen: v5e
topology: v5e:2x2
jax: 0.10.0
libtpu: 0.0.40
codegen_flags: <defaults>
</compile_context>

<pallas_src>
import numpy as np
import jax
import jax.numpy as jnp
from jax.experimental import pallas as pl
from jax.experimental.pallas import tpu as pltpu


# --------------------------------------------------------------------------- #
# Host-side packing helper: many small constants -> one contiguous buffer.     #
# --------------------------------------------------------------------------- #
def _pack_blocks(blocks, lane_width, row_align=16):
    """Pack named 2-D blocks row-wise into one zero-padded (R, lane_width) array.

    Returns (array, offsets) with offsets[name] = (row0, nrows, ncols) of the
    un-padded block so the kernel can recover each matrix with a static slice.
    Row starts are aligned to 16 rows (bf16 sublane-packing granule).
    """
    offs, chunks, r = {}, [], 0
    for name, arr in blocks:
        arr = np.asarray(arr, np.float32)
        nr, nc = arr.shape
        assert nc <= lane_width, (name, arr.shape, lane_width)
        nr_pad = -(-nr // row_align) * row_align
        buf = np.zeros((nr_pad, lane_width), np.float32)
        buf[:nr, :nc] = arr
        offs[name] = (r, nr, nc)
        chunks.append(buf)
        r += nr_pad
    return np.concatenate(chunks, axis=0), offs


# --------------------------------------------------------------------------- #
# Fused kernel: the whole forward pass, everything stays in VMEM.              #
# --------------------------------------------------------------------------- #
def _make_kernel(meta):
    conv_pad = meta["conv_pad"]          # conv columns padded to a lane-tile
    C = meta["C"]                        # C_nums
    ow = meta["offs_w"]                  # static offsets into the wide buffer
    on = meta["offs_n"]                  # static offsets into the narrow buffer

    def kernel(x_ref, bufw_ref, bufn_ref, out_ref):
        f32, bf16 = jnp.float32, jnp.bfloat16

        def wblk(name):                  # slice of the wide packed buffer
            r0, nr, _ = ow[name]
            return bufw_ref[r0:r0 + nr, :]

        def nblk(name):                  # slice of the narrow packed buffer
            r0, nr, nc = on[name]
            return bufn_ref[r0:r0 + nr, 0:nc]

        xb = x_ref[...].astype(bf16)                                     # (TM, W*D)

        # (1) CNN_normal + 3 CNN_expand convs (im2col folded into the weights)
        #     AND the shortcut Conv2d+BN2d, all as ONE GEMM with fused bias.
        y = (jnp.dot(xb, wblk("W0"), preferred_element_type=f32)
             + wblk("B0").astype(f32))                                   # (TM, lanes)
        conv = jnp.maximum(y[:, :conv_pad], 0.0)                         # relu(conv)
        resid = y[:, conv_pad:conv_pad + 4 * C]                          # pooled shortcut

        # (2) Every AdaptiveAvgPool2d((1,1)) (incl. torch's scrambled c1
        #     regroup) as one GEMM with a constant pooling matrix + residual.
        pools = (jnp.dot(conv.astype(bf16), nblk("p_big"),
                         preferred_element_type=f32) + resid)            # (TM, 4*C)

        # (3) SE block: scale-mean folded into fc1 (qf1 = mean_mat @ fc1_w).
        se = jnp.maximum(jnp.dot(pools.astype(bf16), nblk("qf1"),
                                 preferred_element_type=f32)
                         + nblk("fc1_b").astype(f32), 0.0)               # (TM, hid_p)
        gate = jax.nn.sigmoid(jnp.dot(se.astype(bf16), nblk("fc2_w"),
                                      preferred_element_type=f32)
                              + nblk("fc2_b").astype(f32))               # (TM, C)
        # replicate the per-channel gate over the 4 scales (pools is scale-major)
        scaled = pools * jnp.concatenate([gate, gate, gate, gate], axis=1)

        # (4) Batch_Net head (Linear+BN1d+ReLU x2, Linear); BN folded, the torch
        #     (channel, scale) flatten order folded into the rows of w1, last
        #     layer padded to 128 lanes for a dense (unmasked) output store.
        h = jnp.maximum(jnp.dot(scaled.astype(bf16), nblk("w1"),
                                preferred_element_type=f32)
                        + nblk("b1").astype(f32), 0.0)
        h = jnp.maximum(jnp.dot(h.astype(bf16), nblk("w2"),
                                preferred_element_type=f32)
                        + nblk("b2").astype(f32), 0.0)
        out_ref[...] = (jnp.dot(h.astype(bf16), nblk("w3"),
                                preferred_element_type=f32)
                        + nblk("b3").astype(f32))

    return kernel


# --------------------------------------------------------------------------- #
# One-time parameter folding (im2col fold + BN eval fold + constant matrices). #
# --------------------------------------------------------------------------- #
def fold_params(params, *, dims, windows, skip, C_nums, C_steps):
    eps = 1e-5
    D, W, C, CS = dims, windows, C_nums, C_steps
    K = W * D                                   # kernel input = x.reshape(B, D*W)
    h1_out = W - CS + 1
    pad = skip - W % (skip + 1) + 1
    assert pad > 0, "only the torch pad>0 path is implemented"
    Wp = W + pad
    Gh = D * (skip + 1)                         # c2 height
    L = Wp // (skip + 1)                        # c2 width
    Hout = skip + 1
    kernels = (2, 3, 5)
    wouts = [L - kw + 1 for kw in kernels]

    conv_cols = h1_out * C + sum(Hout * wo * C for wo in wouts)
    conv_pad = -(-conv_cols // 128) * 128       # pad conv block to a lane tile
    tot_cols = conv_pad + 4 * C                 # + pooled-shortcut columns
    lanes_w = -(-tot_cols // 128) * 128

    def g(name):
        return np.asarray(params[name], np.float32)

    # ---- W0 / B0: all convs + shortcut, acting directly on x_flat ----------
    # x_flat[d*W + w] = x[d, w];  c1[w, d] = x[d, w]  (torch view+permute folded)
    W0 = np.zeros((K, tot_cols), np.float32)
    B0 = np.zeros((1, tot_cols), np.float32)

    # CNN_normal: Conv2d(1, C, (CS, D)) on c1 (B,1,W,D) -> cols p*C + c
    wn = g("cnn_normal_w").reshape(C, CS, D)
    bn = g("cnn_normal_b")
    for p in range(h1_out):
        B0[0, p * C:(p + 1) * C] = bn
        for r in range(CS):
            for d in range(D):
                W0[d * W + (p + r), p * C:(p + 1) * C] += wn[:, r, d]

    # CNN_expand_k: Conv2d(1, C, (D, kw), stride=(D,1)) on the scrambled,
    # zero-padded c2 tensor; every input element is a (possibly zero) pick of x.
    off = h1_out * C
    for nb, kw in enumerate(kernels):
        we = g(f"expand{nb + 1}_w").reshape(C, D, kw)
        be = g(f"expand{nb + 1}_b")
        wout = wouts[nb]
        for h in range(Hout):
            for wo in range(wout):
                cb = off + (h * wout + wo) * C
                B0[0, cb:cb + C] = be
                for d in range(D):
                    for r in range(kw):
                        q = (wo + r) * Gh + (h * D + d)   # flat idx in (L, Gh)
                        i, j = q // Wp, q % Wp            # idx in padded (D, Wp)
                        if j < W:                          # else: zero pad elem
                            k = i * W + j                  # flat idx of c1 (W, D)
                            src = (k % D) * W + (k // D)   # -> x_flat index
                            W0[src, cb:cb + C] += we[:, d, r]
        off += Hout * wout * C

    # ---- pooling matrices (AdaptiveAvgPool2d + torch's scrambled regroup) ---
    flat_k = np.arange(h1_out * C)
    grp = flat_k // h1_out                     # pool group after reshape(B,C,-1,1)
    pos = flat_k // C                          # conv position (residual index)
    r_map = np.zeros((h1_out, C), np.float32)  # residual -> pooled c1 groups
    np.add.at(r_map, (pos, grp), 1.0 / h1_out)

    p_big = np.zeros((conv_pad, 4 * C), np.float32)
    p_big[flat_k, grp] = 1.0 / h1_out          # c1 scale (group 0..C-1)
    off = h1_out * C
    for nb, kw in enumerate(kernels):
        wout = wouts[nb]
        npos = Hout * wout
        for p in range(npos):
            rows = off + p * C + np.arange(C)
            p_big[rows, (nb + 1) * C + np.arange(C)] = 1.0 / npos
        off += npos * C

    # ---- shortcut Conv2d + BN2d (eval fold), pooled, merged into W0/B0 ------
    s_sc = g("shortcut_bn_gamma") / np.sqrt(g("shortcut_bn_var") + eps)
    sh = g("shortcut_bn_beta") - g("shortcut_bn_mean") * s_sc
    wsc = g("shortcut_w").reshape(h1_out, W, D)
    w_res = np.einsum("owd,o,og->wdg", wsc, s_sc, r_map)          # (W, D, C)
    for d in range(D):
        W0[d * W:(d + 1) * W, conv_pad:conv_pad + C] += w_res[:, d, :]
    B0[0, conv_pad:conv_pad + C] = sh @ r_map

    # ---- SE block: fold the scale-mean into fc1; pad hid to >= 8 ------------
    hid = int(round(C / 16))
    hid_p = -(-hid // 8) * 8
    qf1 = np.zeros((4 * C, hid_p), np.float32)
    qf1[:, :hid] = np.tile(g("fc1_w").T, (4, 1)) / 4.0            # (4C, hid)
    fc1_b = np.zeros((1, hid_p), np.float32)
    fc1_b[0, :hid] = g("fc1_b")
    fc2_w = np.zeros((hid_p, C), np.float32)
    fc2_w[:hid, :] = g("fc2_w").T
    fc2_b = g("fc2_b")[None, :]

    # ---- Batch_Net head: fold BN1d + torch (channel, scale) flatten order ---
    s1 = g("bn1_gamma") / np.sqrt(g("bn1_var") + eps)
    w1 = g("fc_l1_w").T * s1[None, :]                              # (4C, D)
    b1 = (g("fc_l1_b") * s1 + g("bn1_beta") - g("bn1_mean") * s1)[None, :]
    perm = (np.arange(4 * C) % C) * 4 + (np.arange(4 * C) // C)    # scale-major ->
    w1 = w1[perm, :]                                               # torch flatten

    s2 = g("bn2_gamma") / np.sqrt(g("bn2_var") + eps)
    w2 = g("fc_l2_w").T * s2[None, :]
    b2 = (g("fc_l2_b") * s2 + g("bn2_beta") - g("bn2_mean") * s2)[None, :]

    OUTP = 128                                                     # lane-dense out
    w3 = np.zeros((D, OUTP), np.float32)
    w3[:, :D] = g("fc_l3_w").T
    b3 = np.zeros((1, OUTP), np.float32)
    b3[0, :D] = g("fc_l3_b")

    # ---- pack everything into two bf16 buffers (3 input DMAs total) ---------
    bufw_np, offs_w = _pack_blocks([("W0", W0), ("B0", B0)], lanes_w)
    bufn_np, offs_n = _pack_blocks(
        [("p_big", p_big), ("qf1", qf1), ("fc1_b", fc1_b), ("fc2_w", fc2_w),
         ("fc2_b", fc2_b), ("w1", w1), ("b1", b1), ("w2", w2), ("b2", b2),
         ("w3", w3), ("b3", b3)], OUTP)

    arrays = {"bufw": jnp.asarray(bufw_np, dtype=jnp.bfloat16),
              "bufn": jnp.asarray(bufn_np, dtype=jnp.bfloat16)}
    meta = {"K": K, "conv_pad": conv_pad, "C": C, "D": D,
            "offs_w": offs_w, "offs_n": offs_n, "out_pad": OUTP}
    return arrays, meta


# --------------------------------------------------------------------------- #
# Forward: one reshape in the wrapper, single pallas_call, batch grid axis.    #
# --------------------------------------------------------------------------- #
def build_forward(meta):
    kernel = _make_kernel(meta)
    D, K, OUTP = meta["D"], meta["K"], meta["out_pad"]

    def forward(bufw, bufn, x):
        B = x.shape[0]
        # torch: c1 = x.view(B,1,D,W).permute(...); every later gather/permute/
        # pool is folded into the packed weights, so only raw x_flat is needed.
        x_flat = x.reshape(B, K).astype(jnp.float32)
        tm = B if B <= 256 else 256                 # batch tile (multiple of 8 when tiled)
        bp = -(-B // tm) * tm
        if bp != B:
            x_flat = jnp.concatenate(
                [x_flat, jnp.zeros((bp - B, K), jnp.float32)], axis=0)

        out = pl.pallas_call(
            kernel,
            out_shape=jax.ShapeDtypeStruct((bp, OUTP), jnp.float32),
            grid=(bp // tm,),
            in_specs=[
                pl.BlockSpec((tm, K), lambda i: (i, 0)),          # activations
                pl.BlockSpec(bufw.shape, lambda i: (0, 0)),       # packed GEMM wts
                pl.BlockSpec(bufn.shape, lambda i: (0, 0)),       # packed small wts
            ],
            out_specs=pl.BlockSpec((tm, OUTP), lambda i: (i, 0)),
            compiler_params=pltpu.CompilerParams(
                dimension_semantics=("parallel",),                # shards TCs on v7x
                vmem_limit_bytes=32 * 1024 * 1024),
        )(x_flat, bufw, bufn)
        # torch ends with torch.squeeze(c); for B > 1 and D > 1 that is a no-op,
        # so return the (B, D) slice without a blanket squeeze.
        return out[:B, :D]

    return jax.jit(forward)


# --------------------------------------------------------------------------- #
# Random parameters matching the PyTorch module's layer shapes.                #
# --------------------------------------------------------------------------- #
def init_params(key, dims, windows, skip, C_nums, C_steps):
    shortcut_out = windows - C_steps + 1
    hid = int(round(C_nums / 16))
    ks = list(jax.random.split(key, 24))

    def nrm(k, shape, scale=0.1):
        return scale * jax.random.normal(k, shape, dtype=jnp.float32)

    p = {}
    p["cnn_normal_w"] = nrm(ks[0], (C_nums, 1, C_steps, dims))
    p["cnn_normal_b"] = nrm(ks[1], (C_nums,))
    p["shortcut_w"] = nrm(ks[2], (shortcut_out, windows, 1, dims))
    p["shortcut_bn_gamma"] = jnp.ones((shortcut_out,), jnp.float32)
    p["shortcut_bn_beta"] = jnp.zeros((shortcut_out,), jnp.float32)
    p["shortcut_bn_mean"] = jnp.zeros((shortcut_out,), jnp.float32)
    p["shortcut_bn_var"] = jnp.ones((shortcut_out,), jnp.float32)
    for i, kw in enumerate((2, 3, 5)):
        p[f"expand{i + 1}_w"] = nrm(ks[3 + 2 * i], (C_nums, 1, dims, kw))
        p[f"expand{i + 1}_b"] = nrm(ks[4 + 2 * i], (C_nums,))
    p["fc1_w"] = nrm(ks[9], (hid, C_nums))
    p["fc1_b"] = nrm(ks[10], (hid,))
    p["fc2_w"] = nrm(ks[11], (C_nums, hid))
    p["fc2_b"] = nrm(ks[12], (C_nums,))
    p["fc_l1_w"] = nrm(ks[13], (dims, C_nums * 4))
    p["fc_l1_b"] = nrm(ks[14], (dims,))
    p["bn1_gamma"] = jnp.ones((dims,), jnp.float32)
    p["bn1_beta"] = jnp.zeros((dims,), jnp.float32)
    p["bn1_mean"] = jnp.zeros((dims,), jnp.float32)
    p["bn1_var"] = jnp.ones((dims,), jnp.float32)
    p["fc_l2_w"] = nrm(ks[15], (dims, dims))
    p["fc_l2_b"] = nrm(ks[16], (dims,))
    p["bn2_gamma"] = jnp.ones((dims,), jnp.float32)
    p["bn2_beta"] = jnp.zeros((dims,), jnp.float32)
    p["bn2_mean"] = jnp.zeros((dims,), jnp.float32)
    p["bn2_var"] = jnp.ones((dims,), jnp.float32)
    p["fc_l3_w"] = nrm(ks[17], (dims, dims))
    p["fc_l3_b"] = nrm(ks[18], (dims,))
    return p


# ------------------------------------------------------------------- main --- #
if __name__ == "__main__":
    windows, steps, skip, dims, C_nums, C_steps = 16, 4, 3, 4, 16, 3
    batch = 2

    key = jax.random.PRNGKey(0)
    k_param, k_x = jax.random.split(key)
    params = init_params(k_param, dims, windows, skip, C_nums, C_steps)
    x = jax.random.normal(k_x, (batch, dims, windows), dtype=jnp.float32)

    arrays, meta = fold_params(params, dims=dims, windows=windows, skip=skip,
                               C_nums=C_nums, C_steps=C_steps)
    fwd = build_forward(meta)

    out = jax.block_until_ready(fwd(arrays["bufw"], arrays["bufn"], x))
    assert out.shape == (batch, dims), out.shape
    print("KERNEL_OK")
</pallas_src>

<mosaic_0001>
module attributes {stable_mosaic.version = 11 : i64} {
  func.func @kernel(%arg0: i32, %arg1: memref<2x64xf32, #tpu.memory_space<vmem>>, %arg2: memref<80x896xbf16, #tpu.memory_space<vmem>>, %arg3: memref<1024x128xbf16, #tpu.memory_space<vmem>>, %arg4: memref<2x128xf32, #tpu.memory_space<vmem>>) attributes {dimension_semantics = [#tpu.dimension_semantics<parallel>], iteration_bounds = array<i64: 1>, scalar_prefetch = 0 : i64, scratch_operands = 0 : i64, tpu.core_type = #tpu.core_type<tc>, window_params = [{transform_indices = @transform_0, window_bounds = array<i64: 2, 64>}, {pipeline_mode = #tpu.pipeline_mode<synchronous>, transform_indices = @transform_1, window_bounds = array<i64: 80, 896>}, {pipeline_mode = #tpu.pipeline_mode<synchronous>, transform_indices = @transform_2, window_bounds = array<i64: 1024, 128>}, {transform_indices = @transform_3, window_bounds = array<i64: 2, 128>}]} {
    %c0 = arith.constant 0 : index
    %c0_0 = arith.constant 0 : index
    %0 = vector.load %arg1[%c0, %c0_0] : memref<2x64xf32, #tpu.memory_space<vmem>>, vector<2x64xf32>
    %1 = arith.truncf %0 : vector<2x64xf32> to vector<2x64xbf16>
    %c0_1 = arith.constant 0 : index
    %c0_2 = arith.constant 0 : index
    %2 = vector.load %arg2[%c0_1, %c0_2] : memref<80x896xbf16, #tpu.memory_space<vmem>>, vector<64x896xbf16>
    %cst = arith.constant dense<0.000000e+00> : vector<2x896xf32>
    %3 = tpu.matmul %1, %2, %cst {dimension_numbers = #tpu.dot_dimension_numbers<[1], [0], [0], [1], [0, 0, 1, 1], [], []>} : vector<2x64xbf16>, vector<64x896xbf16>, vector<2x896xf32> -> vector<2x896xf32>
    %c64 = arith.constant 64 : index
    %c0_3 = arith.constant 0 : index
    %4 = vector.load %arg2[%c64, %c0_3] : memref<80x896xbf16, #tpu.memory_space<vmem>>, vector<1x896xbf16>
    %5 = arith.extf %4 : vector<1x896xbf16> to vector<1x896xf32>
    %6 = vector.broadcast %5 : vector<1x896xf32> to vector<2x896xf32>
    %7 = arith.addf %3, %6 : vector<2x896xf32>
    %8 = vector.extract_strided_slice %7 {offsets = [0, 0], sizes = [2, 768], strides = [1, 1]} : vector<2x896xf32> to vector<2x768xf32>
    %cst_4 = arith.constant 0.000000e+00 : f32
    %9 = vector.broadcast %cst_4 : f32 to vector<2x768xf32>
    %10 = arith.maximumf %8, %9 : vector<2x768xf32>
    %11 = vector.extract_strided_slice %7 {offsets = [0, 768], sizes = [2, 64], strides = [1, 1]} : vector<2x896xf32> to vector<2x64xf32>
    %12 = arith.truncf %10 : vector<2x768xf32> to vector<2x768xbf16>
    %c0_5 = arith.constant 0 : index
    %c0_6 = arith.constant 0 : index
    %13 = vector.load %arg3[%c0_5, %c0_6] : memref<1024x128xbf16, #tpu.memory_space<vmem>>, vector<768x64xbf16>
    %cst_7 = arith.constant dense<0.000000e+00> : vector<2x64xf32>
    %14 = tpu.matmul %12, %13, %cst_7 {dimension_numbers = #tpu.dot_dimension_numbers<[1], [0], [0], [1], [0, 0, 1, 1], [], []>} : vector<2x768xbf16>, vector<768x64xbf16>, vector<2x64xf32> -> vector<2x64xf32>
    %15 = arith.addf %14, %11 : vector<2x64xf32>
    %16 = arith.truncf %15 : vector<2x64xf32> to vector<2x64xbf16>
    %c768 = arith.constant 768 : index
    %c0_8 = arith.constant 0 : index
    %17 = vector.load %arg3[%c768, %c0_8] : memref<1024x128xbf16, #tpu.memory_space<vmem>>, vector<64x8xbf16>
    %cst_9 = arith.constant dense<0.000000e+00> : vector<2x8xf32>
    %18 = tpu.matmul %16, %17, %cst_9 {dimension_numbers = #tpu.dot_dimension_numbers<[1], [0], [0], [1], [0, 0, 1, 1], [], []>} : vector<2x64xbf16>, vector<64x8xbf16>, vector<2x8xf32> -> vector<2x8xf32>
    %c832 = arith.constant 832 : index
    %c0_10 = arith.constant 0 : index
    %19 = vector.load %arg3[%c832, %c0_10] : memref<1024x128xbf16, #tpu.memory_space<vmem>>, vector<1x8xbf16>
    %20 = arith.extf %19 : vector<1x8xbf16> to vector<1x8xf32>
    %21 = vector.broadcast %20 : vector<1x8xf32> to vector<2x8xf32>
    %22 = arith.addf %18, %21 : vector<2x8xf32>
    %cst_11 = arith.constant 0.000000e+00 : f32
    %23 = vector.broadcast %cst_11 : f32 to vector<2x8xf32>
    %24 = arith.maximumf %22, %23 : vector<2x8xf32>
    %25 = arith.truncf %24 : vector<2x8xf32> to vector<2x8xbf16>
    %c848 = arith.constant 848 : index
    %c0_12 = arith.constant 0 : index
    %26 = vector.load %arg3[%c848, %c0_12] : memref<1024x128xbf16, #tpu.memory_space<vmem>>, vector<8x16xbf16>
    %cst_13 = arith.constant dense<0.000000e+00> : vector<2x16xf32>
    %27 = tpu.matmul %25, %26, %cst_13 {dimension_numbers = #tpu.dot_dimension_numbers<[1], [0], [0], [1], [0, 0, 1, 1], [], []>} : vector<2x8xbf16>, vector<8x16xbf16>, vector<2x16xf32> -> vector<2x16xf32>
    %c864 = arith.constant 864 : index
    %c0_14 = arith.constant 0 : index
    %28 = vector.load %arg3[%c864, %c0_14] : memref<1024x128xbf16, #tpu.memory_space<vmem>>, vector<1x16xbf16>
    %29 = arith.extf %28 : vector<1x16xbf16> to vector<1x16xf32>
    %30 = vector.broadcast %29 : vector<1x16xf32> to vector<2x16xf32>
    %31 = arith.addf %27, %30 : vector<2x16xf32>
    %32 = arith.negf %31 : vector<2x16xf32>
    %33 = math.exp %32 : vector<2x16xf32>
    %cst_15 = arith.constant 1.000000e+00 : f32
    %34 = vector.broadcast %cst_15 : f32 to vector<2x16xf32>
    %35 = arith.addf %34, %33 : vector<2x16xf32>
    %36 = arith.divf %34, %35 : vector<2x16xf32>
    %37 = tpu.concatenate %36, %36, %36, %36 in 1 : vector<2x16xf32>, vector<2x16xf32>, vector<2x16xf32>, vector<2x16xf32> -> vector<2x64xf32>
    %38 = arith.mulf %15, %37 : vector<2x64xf32>
    %39 = arith.truncf %38 : vector<2x64xf32> to vector<2x64xbf16>
    %c880 = arith.constant 880 : index
    %c0_16 = arith.constant 0 : index
    %40 = vector.load %arg3[%c880, %c0_16] : memref<1024x128xbf16, #tpu.memory_space<vmem>>, vector<64x4xbf16>
    %cst_17 = arith.constant dense<0.000000e+00> : vector<2x4xf32>
    %41 = tpu.matmul %39, %40, %cst_17 {dimension_numbers = #tpu.dot_dimension_numbers<[1], [0], [0], [1], [0, 0, 1, 1], [], []>} : vector<2x64xbf16>, vector<64x4xbf16>, vector<2x4xf32> -> vector<2x4xf32>
    %c944 = arith.constant 944 : index
    %c0_18 = arith.constant 0 : index
    %42 = vector.load %arg3[%c944, %c0_18] : memref<1024x128xbf16, #tpu.memory_space<vmem>>, vector<1x4xbf16>
    %43 = arith.extf %42 : vector<1x4xbf16> to vector<1x4xf32>
    %44 = vector.broadcast %43 : vector<1x4xf32> to vector<2x4xf32>
    %45 = arith.addf %41, %44 : vector<2x4xf32>
    %cst_19 = arith.constant 0.000000e+00 : f32
    %46 = vector.broadcast %cst_19 : f32 to vector<2x4xf32>
    %47 = arith.maximumf %45, %46 : vector<2x4xf32>
    %48 = arith.truncf %47 : vector<2x4xf32> to vector<2x4xbf16>
    %c960 = arith.constant 960 : index
    %c0_20 = arith.constant 0 : index
    %49 = vector.load %arg3[%c960, %c0_20] : memref<1024x128xbf16, #tpu.memory_space<vmem>>, vector<4x4xbf16>
    %cst_21 = arith.constant dense<0.000000e+00> : vector<2x4xf32>
    %50 = tpu.matmul %48, %49, %cst_21 {dimension_numbers = #tpu.dot_dimension_numbers<[1], [0], [0], [1], [0, 0, 1, 1], [], []>} : vector<2x4xbf16>, vector<4x4xbf16>, vector<2x4xf32> -> vector<2x4xf32>
    %c976 = arith.constant 976 : index
    %c0_22 = arith.constant 0 : index
    %51 = vector.load %arg3[%c976, %c0_22] : memref<1024x128xbf16, #tpu.memory_space<vmem>>, vector<1x4xbf16>
    %52 = arith.extf %51 : vector<1x4xbf16> to vector<1x4xf32>
    %53 = vector.broadcast %52 : vector<1x4xf32> to vector<2x4xf32>
    %54 = arith.addf %50, %53 : vector<2x4xf32>
    %cst_23 = arith.constant 0.000000e+00 : f32
    %55 = vector.broadcast %cst_23 : f32 to vector<2x4xf32>
    %56 = arith.maximumf %54, %55 : vector<2x4xf32>
    %57 = arith.truncf %56 : vector<2x4xf32> to vector<2x4xbf16>
    %c992 = arith.constant 992 : index
    %c0_24 = arith.constant 0 : index
    %58 = vector.load %arg3[%c992, %c0_24] : memref<1024x128xbf16, #tpu.memory_space<vmem>>, vector<4x128xbf16>
    %cst_25 = arith.constant dense<0.000000e+00> : vector<2x128xf32>
    %59 = tpu.matmul %57, %58, %cst_25 {dimension_numbers = #tpu.dot_dimension_numbers<[1], [0], [0], [1], [0, 0, 1, 1], [], []>} : vector<2x4xbf16>, vector<4x128xbf16>, vector<2x128xf32> -> vector<2x128xf32>
    %c1008 = arith.constant 1008 : index
    %c0_26 = arith.constant 0 : index
    %60 = vector.load %arg3[%c1008, %c0_26] : memref<1024x128xbf16, #tpu.memory_space<vmem>>, vector<1x128xbf16>
    %61 = arith.extf %60 : vector<1x128xbf16> to vector<1x128xf32>
    %62 = vector.broadcast %61 : vector<1x128xf32> to vector<2x128xf32>
    %63 = arith.addf %59, %62 : vector<2x128xf32>
    %c0_27 = arith.constant 0 : index
    %c0_28 = arith.constant 0 : index
    %64 = vector.load %arg4[%c0_27, %c0_28] : memref<2x128xf32, #tpu.memory_space<vmem>>, vector<2x128xf32>
    tpu.vector_store %arg4[%c0_27, %c0_28], %63 {strides = array<i32>} : memref<2x128xf32, #tpu.memory_space<vmem>>, vector<2x128xf32>,
    return
  }
  func.func @transform_0(%arg0: i32) -> (i32, i32) {
    %c0_i32 = arith.constant 0 : i32
    %c0_i32_0 = arith.constant 0 : i32
    return %arg0, %c0_i32 : i32, i32
  }
  func.func @transform_1(%arg0: i32) -> (i32, i32) {
    %c0_i32 = arith.constant 0 : i32
    %c0_i32_0 = arith.constant 0 : i32
    %c0_i32_1 = arith.constant 0 : i32
    return %c0_i32, %c0_i32_0 : i32, i32
  }
  func.func @transform_2(%arg0: i32) -> (i32, i32) {
    %c0_i32 = arith.constant 0 : i32
    %c0_i32_0 = arith.constant 0 : i32
    %c0_i32_1 = arith.constant 0 : i32
    return %c0_i32, %c0_i32_0 : i32, i32
  }
  func.func @transform_3(%arg0: i32) -> (i32, i32) {
    %c0_i32 = arith.constant 0 : i32
    %c0_i32_0 = arith.constant 0 : i32
    return %arg0, %c0_i32 : i32, i32
  }
}

</mosaic_0001>

<llo_original>
// kernel: forward.1
$region0: #{forward.1}
  #allocation0 [shape = 'u32[]', space=smem, size = 0x4, offset = 0x4, fixed_abs, tag = 'smem constant byte address 0x4 - core index']
  #allocation1 [shape = 'u32[72,128]{1,0:T(1,128)}', space=vmem, size = 0x9000, scoped, tag = 'internal scratch']
  %s0 = inlined_call_operand.vmem [shape: f32[2,64], index: 0, kind: input, shape index: {}]
  %s1 = inlined_call_operand.hbm [shape: bf16[80,896], index: 1, kind: input, shape index: {}]
  %s2 = inlined_call_operand.hbm [shape: bf16[1024,128], index: 2, kind: input, shape index: {}]
  %s3 = inlined_call_operand.hbm [shape: f32[2,128], index: 3, kind: output, shape index: {}]
  %s4 = sld [smem:[#allocation0]]
  $region30: #{forward.1} parent=0
    _
  %s6 = ssub.s32 1, %s4
  %s7 = scalar_select 0, %s6, %s4
  $region1: #{forward.1} parent=0
    #allocation2 [shape = 'u8[143360]{0}', space=vmem, size = 0x23000, scoped, tag = 'input window, operand 1, single buffered']
    #allocation3 [shape = 's32[1]{0}', space=sflag, size = 0x4, scoped, tag = 'scoped memory for forward.1']
    #allocation4 [shape = 's32[1]{0}', space=sflag, size = 0x4, scoped, tag = 'scoped memory for forward.1']
    #allocation5 [shape = 'u8[262144]{0}', space=vmem, size = 0x40000, scoped, tag = 'input window, operand 2, single buffered']
    #allocation6 [shape = 's32[1]{0}', space=sflag, size = 0x4, scoped, tag = 'scoped memory for forward.1']
    #allocation7 [shape = 'u8[1024]{0}', space=vmem, size = 0x400, scoped, tag = 'output window, operand 0, single buffered']
    %8 = vsyncpa [#allocation3], 0
    %9 = vsyncpa [#allocation6], 0
    %10 = vsyncpa [#allocation4], 0
    // Predicated region
    $region2: #{forward.1} parent=1 // pred_check
      _
    $region3: #{forward.1} parent=1 // pred_check_branch
      %12 = sbr.rel (0) target = $region5
    $region4: #{forward.1} parent=1 // pred_region
      _
    $region5: #{forward.1} parent=1 // pred_fallthru
      _
    // Predicated region
    $region6: #{forward.1} parent=1 // pred_check
      _
    $region7: #{forward.1} parent=1 // pred_check_branch
      %14 = sbr.rel (0) target = $region9
    $region8: #{forward.1} parent=1 // pred_region
      %16 = vsyncadd [#allocation3], 0
      %s17 = sshll.u32 %s1, 4
      %s18 = int_to_ptr.hbm [resolvable:$true] %s17
      %s19 = sshll.u32 [#allocation2], 4
      %s20 = int_to_ptr.vmem [resolvable:$true] %s19
      %25 = dma.hbm_to_vmem [thread:$0]  %s18, 4480, %s20, [#allocation3], 448, 448, 28
    $region9: #{forward.1} parent=1 // pred_fallthru
      _
    // Predicated region
    $region10: #{forward.1} parent=1 // pred_check
      _
    $region11: #{forward.1} parent=1 // pred_check_branch
      %27 = sbr.rel (0) target = $region13
    $region12: #{forward.1} parent=1 // pred_region
      %29 = vsyncadd [#allocation6], 0
      %s30 = sshll.u32 %s2, 4
      %s31 = int_to_ptr.hbm [resolvable:$true] %s30
      %s32 = sshll.u32 [#allocation5], 4
      %s33 = int_to_ptr.vmem [resolvable:$true] %s32
      %38 = dma.hbm_to_vmem [thread:$0]  %s31, 8192, %s33, [#allocation6], 64, 64, 4
    $region13: #{forward.1} parent=1 // pred_fallthru
      _
    // Predicated region
    $region14: #{forward.1} parent=1 // pred_check
      _
    $region15: #{forward.1} parent=1 // pred_check_branch
      %40 = sbr.rel (0) target = $region17
    $region16: #{forward.1} parent=1 // pred_region
      %42 = dma.done [#allocation3], 4480
    $region17: #{forward.1} parent=1 // pred_fallthru
      _
    // Predicated region
    $region18: #{forward.1} parent=1 // pred_check
      _
    $region19: #{forward.1} parent=1 // pred_check_branch
      %44 = sbr.rel (0) target = $region21
    $region20: #{forward.1} parent=1 // pred_region
      %46 = dma.done [#allocation6], 8192
    $region21: #{forward.1} parent=1 // pred_fallthru
      _
    %v48 = vld [vmem:[%s0] sm:$0x3]
    %v49 = vpack.c.bf16 %v48, %v48
    %v50 = vld [vmem:[#allocation2] sm:$0xff]
    %v51 = vld [vmem:[#allocation2 + $0x8] sm:$0xff]
    %v52 = vld [vmem:[#allocation2 + $0x10] sm:$0xff]
    %v53 = vld [vmem:[#allocation2 + $0x18] sm:$0xf]
    %v54 = vld [vmem:[#allocation2 + $0x1c] sm:$0xff]
    %v55 = vld [vmem:[#allocation2 + $0x24] sm:$0xff]
    %v56 = vld [vmem:[#allocation2 + $0x2c] sm:$0xff]
    %v57 = vld [vmem:[#allocation2 + $0x34] sm:$0xf]
    %v58 = vld [vmem:[#allocation2 + $0x38] sm:$0xff]
    %v59 = vld [vmem:[#allocation2 + $0x40] sm:$0xff]
    %v60 = vld [vmem:[#allocation2 + $0x48] sm:$0xff]
    %v61 = vld [vmem:[#allocation2 + $0x50] sm:$0xf]
    %v62 = vld [vmem:[#allocation2 + $0x54] sm:$0xff]
    %v63 = vld [vmem:[#allocation2 + $0x5c] sm:$0xff]
    %v64 = vld [vmem:[#allocation2 + $0x64] sm:$0xff]
    %v65 = vld [vmem:[#allocation2 + $0x6c] sm:$0xf]
    %v66 = vld [vmem:[#allocation2 + $0x70] sm:$0xff]
    %v67 = vld [vmem:[#allocation2 + $0x78] sm:$0xff]
    %v68 = vld [vmem:[#allocation2 + $0x80] sm:$0xff]
    %v69 = vld [vmem:[#allocation2 + $0x88] sm:$0xf]
    %v70 = vld [vmem:[#allocation2 + $0x8c] sm:$0xff]
    %v71 = vld [vmem:[#allocation2 + $0x94] sm:$0xff]
    %v72 = vld [vmem:[#allocation2 + $0x9c] sm:$0xff]
    %v73 = vld [vmem:[#allocation2 + $0xa4] sm:$0xf]
    %v74 = vld [vmem:[#allocation2 + $0xa8] sm:$0xff]
    %v75 = vld [vmem:[#allocation2 + $0xb0] sm:$0xff]
    %v76 = vld [vmem:[#allocation2 + $0xb8] sm:$0xff]
    %v77 = vld [vmem:[#allocation2 + $0xc0] sm:$0xf]
    %v78 = vld [vmem:[#allocation2 + $0xc4] sm:$0xff]
    %v79 = vld [vmem:[#allocation2 + $0xcc] sm:$0xff]
    %v80 = vld [vmem:[#allocation2 + $0xd4] sm:$0xff]
    %v81 = vld [vmem:[#allocation2 + $0xdc] sm:$0xf]
    %v82 = vld [vmem:[#allocation2 + $0xe0] sm:$0x11]
    %v83 = vld [vmem:[#allocation2 + $0xe8] sm:$0x11]
    %v84 = vld [vmem:[#allocation2 + $0xf0] sm:$0x11]
    %v85 = vld [vmem:[#allocation2 + $0xf8] sm:$0x1]
    %v86 = vunpack.c.l.bf16 %v82
    %v87 = vunpack.c.h.bf16 %v82
    %v88 = vunpack.c.l.bf16 %v83
    %v89 = vunpack.c.h.bf16 %v83
    %v90 = vunpack.c.l.bf16 %v84
    %v91 = vunpack.c.h.bf16 %v84
    %v92 = vunpack.c.l.bf16 %v85
    %v93 = vperm.slane %v86, 0
    %v94 = vperm.slane %v87, 0
    %v95 = vperm.slane %v88, 0
    %v96 = vperm.slane %v89, 0
    %v97 = vperm.slane %v90, 0
    %v98 = vperm.slane %v91, 0
    %v99 = vperm.slane %v92, 0
    %v132 = vunpack.c.l.b16 %v50
    %v133 = vunpack.c.h.b16 %v50
    %v134 = vunpack.c.l.b16 %v51
    %v135 = vunpack.c.h.b16 %v51
    %v136 = vunpack.c.l.b16 %v52
    %v137 = vunpack.c.h.b16 %v52
    %v138 = vunpack.c.l.b16 %v53
    %v139 = vunpack.c.l.b16 %v54
    %v140 = vunpack.c.h.b16 %v54
    %v141 = vunpack.c.l.b16 %v55
    %v142 = vunpack.c.h.b16 %v55
    %v143 = vunpack.c.l.b16 %v56
    %v144 = vunpack.c.h.b16 %v56
    %v145 = vunpack.c.l.b16 %v57
    %v146 = vunpack.c.l.b16 %v58
    %v147 = vunpack.c.h.b16 %v58
    %v148 = vunpack.c.l.b16 %v59
    %v149 = vunpack.c.h.b16 %v59
    %v150 = vunpack.c.l.b16 %v60
    %v151 = vunpack.c.h.b16 %v60
    %v152 = vunpack.c.l.b16 %v61
    %v153 = vunpack.c.l.b16 %v62
    %v154 = vunpack.c.h.b16 %v62
    %v155 = vunpack.c.l.b16 %v63
    %v156 = vunpack.c.h.b16 %v63
    %v157 = vunpack.c.l.b16 %v64
    %v158 = vunpack.c.h.b16 %v64
    %v159 = vunpack.c.l.b16 %v65
    %v160 = vunpack.c.l.b16 %v66
    %v161 = vunpack.c.h.b16 %v66
    %v162 = vunpack.c.l.b16 %v67
    %v163 = vunpack.c.h.b16 %v67
    %v164 = vunpack.c.l.b16 %v68
    %v165 = vunpack.c.h.b16 %v68
    %v166 = vunpack.c.l.b16 %v69
    %v167 = vunpack.c.l.b16 %v70
    %v168 = vunpack.c.h.b16 %v70
    %v169 = vunpack.c.l.b16 %v71
    %v170 = vunpack.c.h.b16 %v71
    %v171 = vunpack.c.l.b16 %v72
    %v172 = vunpack.c.h.b16 %v72
    %v173 = vunpack.c.l.b16 %v73
    %v174 = vunpack.c.l.b16 %v74
    %v175 = vunpack.c.h.b16 %v74
    %v176 = vunpack.c.l.b16 %v75
    %v177 = vunpack.c.h.b16 %v75
    %v178 = vunpack.c.l.b16 %v76
    %v179 = vunpack.c.h.b16 %v76
    %v180 = vunpack.c.l.b16 %v77
    %v181 = vunpack.c.l.b16 %v78
    %v182 = vunpack.c.h.b16 %v78
    %v183 = vunpack.c.l.b16 %v79
    %v184 = vunpack.c.h.b16 %v79
    %v185 = vunpack.c.l.b16 %v80
    %v186 = vunpack.c.h.b16 %v80
    %v187 = vunpack.c.l.b16 %v81
    %v188 = vpack.c.b16 %v139, %v132
    %v189 = vpack.c.b16 %v140, %v133
    %v190 = vpack.c.b16 %v141, %v134
    %v191 = vpack.c.b16 %v142, %v135
    %v192 = vpack.c.b16 %v143, %v136
    %v193 = vpack.c.b16 %v144, %v137
    %v194 = vpack.c.b16 %v145, %v138
    %v195 = vpack.c.b16 %v153, %v146
    %v196 = vpack.c.b16 %v154, %v147
    %v197 = vpack.c.b16 %v155, %v148
    %v198 = vpack.c.b16 %v156, %v149
    %v199 = vpack.c.b16 %v157, %v150
    %v200 = vpack.c.b16 %v158, %v151
    %v201 = vpack.c.b16 %v159, %v152
    %v202 = vpack.c.b16 %v167, %v160
    %v203 = vpack.c.b16 %v168, %v161
    %v204 = vpack.c.b16 %v169, %v162
    %v205 = vpack.c.b16 %v170, %v163
    %v206 = vpack.c.b16 %v171, %v164
    %v207 = vpack.c.b16 %v172, %v165
    %v208 = vpack.c.b16 %v173, %v166
    %v209 = vpack.c.b16 %v181, %v174
    %v210 = vpack.c.b16 %v182, %v175
    %v211 = vpack.c.b16 %v183, %v176
    %v212 = vpack.c.b16 %v184, %v177
    %v213 = vpack.c.b16 %v185, %v178
    %v214 = vpack.c.b16 %v186, %v179
    %v215 = vpack.c.b16 %v187, %v180
    %vm244 = vcmask 523264
    %v246 = vsel %vm244, %v49, 0
    %248 = vmatpush.bf16.msra.mxu0 0
    %249 = vmatpush.bf16.msra.mxu0 0
    %250 = vmatpush.bf16.msra.mxu0 0
    %251 = vmatpush.bf16.msra.mxu0 0
    %252 = vmatpush.bf16.msra.mxu0 %v209
    %253 = vmatpush.bf16.msra.mxu0 %v202
    %254 = vmatpush.bf16.msra.mxu0 %v195
    %255 = vmatpush.bf16.msra.mxu0 %v188
    %256 = vmatmul.bf16.gmra.mxu0 %v246
    %v257 = vpop.f32.mrf.mxu0
    %v258 = vadd.f32 %v93, %v257
    %v259 = vpop.f32.mrf.mxu0
    %260 = vdwg.mxu0
    %261 = vmatpush.bf16.msra.mxu0 0
    %262 = vmatpush.bf16.msra.mxu0 0
    %263 = vmatpush.bf16.msra.mxu0 0
    %264 = vmatpush.bf16.msra.mxu0 0
    %265 = vmatpush.bf16.msra.mxu0 %v210
    %266 = vmatpush.bf16.msra.mxu0 %v203
    %267 = vmatpush.bf16.msra.mxu0 %v196
    %268 = vmatpush.bf16.msra.mxu0 %v189
    %269 = vmatmul.bf16.gmra.mxu0 %v246
    %v270 = vpop.f32.mrf.mxu0
    %v271 = vadd.f32 %v94, %v270
    %v272 = vpop.f32.mrf.mxu0
    %273 = vdwg.mxu0
    %274 = vmatpush.bf16.msra.mxu0 0
    %275 = vmatpush.bf16.msra.mxu0 0
    %276 = vmatpush.bf16.msra.mxu0 0
    %277 = vmatpush.bf16.msra.mxu0 0
    %278 = vmatpush.bf16.msra.mxu0 %v211
    %279 = vmatpush.bf16.msra.mxu0 %v204
    %280 = vmatpush.bf16.msra.mxu0 %v197
    %281 = vmatpush.bf16.msra.mxu0 %v190
    %282 = vmatmul.bf16.gmra.mxu0 %v246
    %v283 = vpop.f32.mrf.mxu0
    %v284 = vadd.f32 %v95, %v283
    %v285 = vpop.f32.mrf.mxu0
    %286 = vdwg.mxu0
    %287 = vmatpush.bf16.msra.mxu0 0
    %288 = vmatpush.bf16.msra.mxu0 0
    %289 = vmatpush.bf16.msra.mxu0 0
    %290 = vmatpush.bf16.msra.mxu0 0
    %291 = vmatpush.bf16.msra.mxu0 %v212
    %292 = vmatpush.bf16.msra.mxu0 %v205
    %293 = vmatpush.bf16.msra.mxu0 %v198
    %294 = vmatpush.bf16.msra.mxu0 %v191
    %295 = vmatmul.bf16.gmra.mxu0 %v246
    %v296 = vpop.f32.mrf.mxu0
    %v297 = vadd.f32 %v96, %v296
    %v298 = vpop.f32.mrf.mxu0
    %299 = vdwg.mxu0
    %300 = vmatpush.bf16.msra.mxu0 0
    %301 = vmatpush.bf16.msra.mxu0 0
    %302 = vmatpush.bf16.msra.mxu0 0
    %303 = vmatpush.bf16.msra.mxu0 0
    %304 = vmatpush.bf16.msra.mxu0 %v213
    %305 = vmatpush.bf16.msra.mxu0 %v206
    %306 = vmatpush.bf16.msra.mxu0 %v199
    %307 = vmatpush.bf16.msra.mxu0 %v192
    %308 = vmatmul.bf16.gmra.mxu0 %v246
    %v309 = vpop.f32.mrf.mxu0
    %v310 = vadd.f32 %v97, %v309
    %v311 = vpop.f32.mrf.mxu0
    %312 = vdwg.mxu0
    %313 = vmatpush.bf16.msra.mxu0 0
    %314 = vmatpush.bf16.msra.mxu0 0
    %315 = vmatpush.bf16.msra.mxu0 0
    %316 = vmatpush.bf16.msra.mxu0 0
    %317 = vmatpush.bf16.msra.mxu0 %v214
    %318 = vmatpush.bf16.msra.mxu0 %v207
    %319 = vmatpush.bf16.msra.mxu0 %v200
    %320 = vmatpush.bf16.msra.mxu0 %v193
    %321 = vmatmul.bf16.gmra.mxu0 %v246
    %v322 = vpop.f32.mrf.mxu0
    %v323 = vadd.f32 %v98, %v322
    %v324 = vpop.f32.mrf.mxu0
    %325 = vdwg.mxu0
    %326 = vmatpush.bf16.msra.mxu0 0
    %327 = vmatpush.bf16.msra.mxu0 0
    %328 = vmatpush.bf16.msra.mxu0 0
    %329 = vmatpush.bf16.msra.mxu0 0
    %330 = vmatpush.bf16.msra.mxu0 %v215
    %331 = vmatpush.bf16.msra.mxu0 %v208
    %332 = vmatpush.bf16.msra.mxu0 %v201
    %333 = vmatpush.bf16.msra.mxu0 %v194
    %334 = vmatmul.bf16.gmra.mxu0 %v246
    %v335 = vpop.f32.mrf.mxu0
    %v336 = vadd.f32 %v99, %v335
    %v337 = vpop.f32.mrf.mxu0
    %338 = vdwg.mxu0
    %v339 = vmax.f32 %v258, 0.0
    %v340 = vmax.f32 %v271, 0.0
    %v341 = vmax.f32 %v284, 0.0
    %v342 = vmax.f32 %v297, 0.0
    %v343 = vmax.f32 %v310, 0.0
    %v344 = vmax.f32 %v323, 0.0
    %v345 = vpack.c.bf16 %v339, %v339
    %v346 = vpack.c.bf16 %v340, %v340
    %v347 = vpack.c.bf16 %v341, %v341
    %v348 = vpack.c.bf16 %v342, %v342
    %v349 = vpack.c.bf16 %v343, %v343
    %v350 = vpack.c.bf16 %v344, %v344
    %v351 = vld [vmem:[#allocation5] sm:$0xf]
    %v352 = vld [vmem:[#allocation5 + $0x4] sm:$0xf]
    %v353 = vld [vmem:[#allocation5 + $0x8] sm:$0xf]
    %v354 = vld [vmem:[#allocation5 + $0xc] sm:$0xf]
    %v355 = vld [vmem:[#allocation5 + $0x10] sm:$0xf]
    %v356 = vld [vmem:[#allocation5 + $0x14] sm:$0xf]
    %v357 = vld [vmem:[#allocation5 + $0x18] sm:$0xf]
    %v358 = vld [vmem:[#allocation5 + $0x1c] sm:$0xf]
    %v359 = vld [vmem:[#allocation5 + $0x20] sm:$0xf]
    %v360 = vld [vmem:[#allocation5 + $0x24] sm:$0xf]
    %v361 = vld [vmem:[#allocation5 + $0x28] sm:$0xf]
    %v362 = vld [vmem:[#allocation5 + $0x2c] sm:$0xf]
    %v363 = vld [vmem:[#allocation5 + $0x30] sm:$0xf]
    %v364 = vld [vmem:[#allocation5 + $0x34] sm:$0xf]
    %v365 = vld [vmem:[#allocation5 + $0x38] sm:$0xf]
    %v366 = vld [vmem:[#allocation5 + $0x3c] sm:$0xf]
    %v367 = vld [vmem:[#allocation5 + $0x40] sm:$0xf]
    %v368 = vld [vmem:[#allocation5 + $0x44] sm:$0xf]
    %v369 = vld [vmem:[#allocation5 + $0x48] sm:$0xf]
    %v370 = vld [vmem:[#allocation5 + $0x4c] sm:$0xf]
    %v371 = vld [vmem:[#allocation5 + $0x50] sm:$0xf]
    %v372 = vld [vmem:[#allocation5 + $0x54] sm:$0xf]
    %v373 = vld [vmem:[#allocation5 + $0x58] sm:$0xf]
    %v374 = vld [vmem:[#allocation5 + $0x5c] sm:$0xf]
    %v375 = vld [vmem:[#allocation5 + $0x60] sm:$0xf]
    %v376 = vld [vmem:[#allocation5 + $0x64] sm:$0xf]
    %v377 = vld [vmem:[#allocation5 + $0x68] sm:$0xf]
    %v378 = vld [vmem:[#allocation5 + $0x6c] sm:$0xf]
    %v379 = vld [vmem:[#allocation5 + $0x70] sm:$0xf]
    %v380 = vld [vmem:[#allocation5 + $0x74] sm:$0xf]
    %v381 = vld [vmem:[#allocation5 + $0x78] sm:$0xf]
    %v382 = vld [vmem:[#allocation5 + $0x7c] sm:$0xf]
    %v383 = vld [vmem:[#allocation5 + $0x80] sm:$0xf]
    %v384 = vld [vmem:[#allocation5 + $0x84] sm:$0xf]
    %v385 = vld [vmem:[#allocation5 + $0x88] sm:$0xf]
    %v386 = vld [vmem:[#allocation5 + $0x8c] sm:$0xf]
    %v387 = vld [vmem:[#allocation5 + $0x90] sm:$0xf]
    %v388 = vld [vmem:[#allocation5 + $0x94] sm:$0xf]
    %v389 = vld [vmem:[#allocation5 + $0x98] sm:$0xf]
    %v390 = vld [vmem:[#allocation5 + $0x9c] sm:$0xf]
    %v391 = vld [vmem:[#allocation5 + $0xa0] sm:$0xf]
    %v392 = vld [vmem:[#allocation5 + $0xa4] sm:$0xf]
    %v393 = vld [vmem:[#allocation5 + $0xa8] sm:$0xf]
    %v394 = vld [vmem:[#allocation5 + $0xac] sm:$0xf]
    %v395 = vld [vmem:[#allocation5 + $0xb0] sm:$0xf]
    %v396 = vld [vmem:[#allocation5 + $0xb4] sm:$0xf]
    %v397 = vld [vmem:[#allocation5 + $0xb8] sm:$0xf]
    %v398 = vld [vmem:[#allocation5 + $0xbc] sm:$0xf]
    %v399 = vld [vmem:[#allocation5 + $0xc0] sm:$0xf]
    %v400 = vld [vmem:[#allocation5 + $0xc4] sm:$0xf]
    %v401 = vld [vmem:[#allocation5 + $0xc8] sm:$0xf]
    %v402 = vld [vmem:[#allocation5 + $0xcc] sm:$0xf]
    %v403 = vld [vmem:[#allocation5 + $0xd0] sm:$0xf]
    %v404 = vld [vmem:[#allocation5 + $0xd4] sm:$0xf]
    %v405 = vld [vmem:[#allocation5 + $0xd8] sm:$0xf]
    %v406 = vld [vmem:[#allocation5 + $0xdc] sm:$0xf]
    %v407 = vld [vmem:[#allocation5 + $0xe0] sm:$0xf]
    %v408 = vld [vmem:[#allocation5 + $0xe4] sm:$0xf]
    %v409 = vld [vmem:[#allocation5 + $0xe8] sm:$0xf]
    %v410 = vld [vmem:[#allocation5 + $0xec] sm:$0xf]
    %v411 = vld [vmem:[#allocation5 + $0xf0] sm:$0xf]
    %v412 = vld [vmem:[#allocation5 + $0xf4] sm:$0xf]
    %v413 = vld [vmem:[#allocation5 + $0xf8] sm:$0xf]
    %v414 = vld [vmem:[#allocation5 + $0xfc] sm:$0xf]
    %v415 = vld [vmem:[#allocation5 + $0x100] sm:$0xf]
    %v416 = vld [vmem:[#allocation5 + $0x104] sm:$0xf]
    %v417 = vld [vmem:[#allocation5 + $0x108] sm:$0xf]
    %v418 = vld [vmem:[#allocation5 + $0x10c] sm:$0xf]
    %v419 = vld [vmem:[#allocation5 + $0x110] sm:$0xf]
    %v420 = vld [vmem:[#allocation5 + $0x114] sm:$0xf]
    %v421 = vld [vmem:[#allocation5 + $0x118] sm:$0xf]
    %v422 = vld [vmem:[#allocation5 + $0x11c] sm:$0xf]
    %v423 = vld [vmem:[#allocation5 + $0x120] sm:$0xf]
    %v424 = vld [vmem:[#allocation5 + $0x124] sm:$0xf]
    %v425 = vld [vmem:[#allocation5 + $0x128] sm:$0xf]
    %v426 = vld [vmem:[#allocation5 + $0x12c] sm:$0xf]
    %v427 = vld [vmem:[#allocation5 + $0x130] sm:$0xf]
    %v428 = vld [vmem:[#allocation5 + $0x134] sm:$0xf]
    %v429 = vld [vmem:[#allocation5 + $0x138] sm:$0xf]
    %v430 = vld [vmem:[#allocation5 + $0x13c] sm:$0xf]
    %v431 = vld [vmem:[#allocation5 + $0x140] sm:$0xf]
    %v432 = vld [vmem:[#allocation5 + $0x144] sm:$0xf]
    %v433 = vld [vmem:[#allocation5 + $0x148] sm:$0xf]
    %v434 = vld [vmem:[#allocation5 + $0x14c] sm:$0xf]
    %v435 = vld [vmem:[#allocation5 + $0x150] sm:$0xf]
    %v436 = vld [vmem:[#allocation5 + $0x154] sm:$0xf]
    %v437 = vld [vmem:[#allocation5 + $0x158] sm:$0xf]
    %v438 = vld [vmem:[#allocation5 + $0x15c] sm:$0xf]
    %v439 = vld [vmem:[#allocation5 + $0x160] sm:$0xf]
    %v440 = vld [vmem:[#allocation5 + $0x164] sm:$0xf]
    %v441 = vld [vmem:[#allocation5 + $0x168] sm:$0xf]
    %v442 = vld [vmem:[#allocation5 + $0x16c] sm:$0xf]
    %v443 = vld [vmem:[#allocation5 + $0x170] sm:$0xf]
    %v444 = vld [vmem:[#allocation5 + $0x174] sm:$0xf]
    %v445 = vld [vmem:[#allocation5 + $0x178] sm:$0xf]
    %v446 = vld [vmem:[#allocation5 + $0x17c] sm:$0xf]
    %v543 = vunpack.c.l.b16 %v351
    %v544 = vunpack.c.l.b16 %v352
    %v545 = vunpack.c.l.b16 %v353
    %v546 = vunpack.c.l.b16 %v354
    %v547 = vunpack.c.l.b16 %v355
    %v548 = vunpack.c.l.b16 %v356
    %v549 = vunpack.c.l.b16 %v357
    %v550 = vunpack.c.l.b16 %v358
    %v551 = vunpack.c.l.b16 %v359
    %v552 = vunpack.c.l.b16 %v360
    %v553 = vunpack.c.l.b16 %v361
    %v554 = vunpack.c.l.b16 %v362
    %v555 = vunpack.c.l.b16 %v363
    %v556 = vunpack.c.l.b16 %v364
    %v557 = vunpack.c.l.b16 %v365
    %v558 = vunpack.c.l.b16 %v366
    %v559 = vunpack.c.l.b16 %v367
    %v560 = vunpack.c.l.b16 %v368
    %v561 = vunpack.c.l.b16 %v369
    %v562 = vunpack.c.l.b16 %v370
    %v563 = vunpack.c.l.b16 %v371
    %v564 = vunpack.c.l.b16 %v372
    %v565 = vunpack.c.l.b16 %v373
    %v566 = vunpack.c.l.b16 %v374
    %v567 = vunpack.c.l.b16 %v375
    %v568 = vunpack.c.l.b16 %v376
    %v569 = vunpack.c.l.b16 %v377
    %v570 = vunpack.c.l.b16 %v378
    %v571 = vunpack.c.l.b16 %v379
    %v572 = vunpack.c.l.b16 %v380
    %v573 = vunpack.c.l.b16 %v381
    %v574 = vunpack.c.l.b16 %v382
    %v575 = vunpack.c.l.b16 %v383
    %v576 = vunpack.c.l.b16 %v384
    %v577 = vunpack.c.l.b16 %v385
    %v578 = vunpack.c.l.b16 %v386
    %v579 = vunpack.c.l.b16 %v387
    %v580 = vunpack.c.l.b16 %v388
    %v581 = vunpack.c.l.b16 %v389
    %v582 = vunpack.c.l.b16 %v390
    %v583 = vunpack.c.l.b16 %v391
    %v584 = vunpack.c.l.b16 %v392
    %v585 = vunpack.c.l.b16 %v393
    %v586 = vunpack.c.l.b16 %v394
    %v587 = vunpack.c.l.b16 %v395
    %v588 = vunpack.c.l.b16 %v396
    %v589 = vunpack.c.l.b16 %v397
    %v590 = vunpack.c.l.b16 %v398
    %v591 = vunpack.c.l.b16 %v399
    %v592 = vunpack.c.l.b16 %v400
    %v593 = vunpack.c.l.b16 %v401
    %v594 = vunpack.c.l.b16 %v402
    %v595 = vunpack.c.l.b16 %v403
    %v596 = vunpack.c.l.b16 %v404
    %v597 = vunpack.c.l.b16 %v405
    %v598 = vunpack.c.l.b16 %v406
    %v599 = vunpack.c.l.b16 %v407
    %v600 = vunpack.c.l.b16 %v408
    %v601 = vunpack.c.l.b16 %v409
    %v602 = vunpack.c.l.b16 %v410
    %v603 = vunpack.c.l.b16 %v411
    %v604 = vunpack.c.l.b16 %v412
    %v605 = vunpack.c.l.b16 %v413
    %v606 = vunpack.c.l.b16 %v414
    %v607 = vunpack.c.l.b16 %v415
    %v608 = vunpack.c.l.b16 %v416
    %v609 = vunpack.c.l.b16 %v417
    %v610 = vunpack.c.l.b16 %v418
    %v611 = vunpack.c.l.b16 %v419
    %v612 = vunpack.c.l.b16 %v420
    %v613 = vunpack.c.l.b16 %v421
    %v614 = vunpack.c.l.b16 %v422
    %v615 = vunpack.c.l.b16 %v423
    %v616 = vunpack.c.l.b16 %v424
    %v617 = vunpack.c.l.b16 %v425
    %v618 = vunpack.c.l.b16 %v426
    %v619 = vunpack.c.l.b16 %v427
    %v620 = vunpack.c.l.b16 %v428
    %v621 = vunpack.c.l.b16 %v429
    %v622 = vunpack.c.l.b16 %v430
    %v623 = vunpack.c.l.b16 %v431
    %v624 = vunpack.c.l.b16 %v432
    %v625 = vunpack.c.l.b16 %v433
    %v626 = vunpack.c.l.b16 %v434
    %v627 = vunpack.c.l.b16 %v435
    %v628 = vunpack.c.l.b16 %v436
    %v629 = vunpack.c.l.b16 %v437
    %v630 = vunpack.c.l.b16 %v438
    %v631 = vunpack.c.l.b16 %v439
    %v632 = vunpack.c.l.b16 %v440
    %v633 = vunpack.c.l.b16 %v441
    %v634 = vunpack.c.l.b16 %v442
    %v635 = vunpack.c.l.b16 %v443
    %v636 = vunpack.c.l.b16 %v444
    %v637 = vunpack.c.l.b16 %v445
    %v638 = vunpack.c.l.b16 %v446
    %v639 = vpack.c.b16 %v544, %v543
    %v640 = vpack.c.b16 %v546, %v545
    %v641 = vpack.c.b16 %v548, %v547
    %v642 = vpack.c.b16 %v550, %v549
    %v643 = vpack.c.b16 %v552, %v551
    %v644 = vpack.c.b16 %v554, %v553
    %v645 = vpack.c.b16 %v556, %v555
    %v646 = vpack.c.b16 %v558, %v557
    %v647 = vpack.c.b16 %v560, %v559
    %v648 = vpack.c.b16 %v562, %v561
    %v649 = vpack.c.b16 %v564, %v563
    %v650 = vpack.c.b16 %v566, %v565
    %v651 = vpack.c.b16 %v568, %v567
    %v652 = vpack.c.b16 %v570, %v569
    %v653 = vpack.c.b16 %v572, %v571
    %v654 = vpack.c.b16 %v574, %v573
    %v655 = vpack.c.b16 %v576, %v575
    %v656 = vpack.c.b16 %v578, %v577
    %v657 = vpack.c.b16 %v580, %v579
    %v658 = vpack.c.b16 %v582, %v581
    %v659 = vpack.c.b16 %v584, %v583
    %v660 = vpack.c.b16 %v586, %v585
    %v661 = vpack.c.b16 %v588, %v587
    %v662 = vpack.c.b16 %v590, %v589
    %v663 = vpack.c.b16 %v592, %v591
    %v664 = vpack.c.b16 %v594, %v593
    %v665 = vpack.c.b16 %v596, %v595
    %v666 = vpack.c.b16 %v598, %v597
    %v667 = vpack.c.b16 %v600, %v599
    %v668 = vpack.c.b16 %v602, %v601
    %v669 = vpack.c.b16 %v604, %v603
    %v670 = vpack.c.b16 %v606, %v605
    %v671 = vpack.c.b16 %v608, %v607
    %v672 = vpack.c.b16 %v610, %v609
    %v673 = vpack.c.b16 %v612, %v611
    %v674 = vpack.c.b16 %v614, %v613
    %v675 = vpack.c.b16 %v616, %v615
    %v676 = vpack.c.b16 %v618, %v617
    %v677 = vpack.c.b16 %v620, %v619
    %v678 = vpack.c.b16 %v622, %v621
    %v679 = vpack.c.b16 %v624, %v623
    %v680 = vpack.c.b16 %v626, %v625
    %v681 = vpack.c.b16 %v628, %v627
    %v682 = vpack.c.b16 %v630, %v629
    %v683 = vpack.c.b16 %v632, %v631
    %v684 = vpack.c.b16 %v634, %v633
    %v685 = vpack.c.b16 %v636, %v635
    %v686 = vpack.c.b16 %v638, %v637
    %735 = vmatpush.bf16.msra.mxu0 %v646
    %736 = vmatpush.bf16.msra.mxu0 %v645
    %737 = vmatpush.bf16.msra.mxu0 %v644
    %738 = vmatpush.bf16.msra.mxu0 %v643
    %739 = vmatpush.bf16.msra.mxu0 %v642
    %740 = vmatpush.bf16.msra.mxu0 %v641
    %741 = vmatpush.bf16.msra.mxu0 %v640
    %742 = vmatpush.bf16.msra.mxu0 %v639
    %743 = vmatmul.bf16.gmra.mxu0 %v345
    %v744 = vpop.f32.mrf.mxu0
    %v745 = vadd.f32 %v336, %v744
    %v746 = vpop.f32.mrf.mxu0
    %747 = vdwg.mxu0
    %748 = vmatpush.bf16.msra.mxu0 %v654
    %749 = vmatpush.bf16.msra.mxu0 %v653
    %750 = vmatpush.bf16.msra.mxu0 %v652
    %751 = vmatpush.bf16.msra.mxu0 %v651
    %752 = vmatpush.bf16.msra.mxu0 %v650
    %753 = vmatpush.bf16.msra.mxu0 %v649
    %754 = vmatpush.bf16.msra.mxu0 %v648
    %755 = vmatpush.bf16.msra.mxu0 %v647
    %756 = vmatmul.bf16.gmra.mxu0 %v346
    %v757 = vpop.f32.mrf.mxu0
    %v758 = vadd.f32 %v745, %v757
    %v759 = vpop.f32.mrf.mxu0
    %760 = vdwg.mxu0
    %761 = vmatpush.bf16.msra.mxu0 %v662
    %762 = vmatpush.bf16.msra.mxu0 %v661
    %763 = vmatpush.bf16.msra.mxu0 %v660
    %764 = vmatpush.bf16.msra.mxu0 %v659
    %765 = vmatpush.bf16.msra.mxu0 %v658
    %766 = vmatpush.bf16.msra.mxu0 %v657
    %767 = vmatpush.bf16.msra.mxu0 %v656
    %768 = vmatpush.bf16.msra.mxu0 %v655
    %769 = vmatmul.bf16.gmra.mxu0 %v347
    %v770 = vpop.f32.mrf.mxu0
    %v771 = vadd.f32 %v758, %v770
    %v772 = vpop.f32.mrf.mxu0
    %773 = vdwg.mxu0
    %774 = vmatpush.bf16.msra.mxu0 %v670
    %775 = vmatpush.bf16.msra.mxu0 %v669
    %776 = vmatpush.bf16.msra.mxu0 %v668
    %777 = vmatpush.bf16.msra.mxu0 %v667
    %778 = vmatpush.bf16.msra.mxu0 %v666
    %779 = vmatpush.bf16.msra.mxu0 %v665
    %780 = vmatpush.bf16.msra.mxu0 %v664
    %781 = vmatpush.bf16.msra.mxu0 %v663
    %782 = vmatmul.bf16.gmra.mxu0 %v348
    %v783 = vpop.f32.mrf.mxu0
    %v784 = vadd.f32 %v771, %v783
    %v785 = vpop.f32.mrf.mxu0
    %786 = vdwg.mxu0
    %787 = vmatpush.bf16.msra.mxu0 %v678
    %788 = vmatpush.bf16.msra.mxu0 %v677
    %789 = vmatpush.bf16.msra.mxu0 %v676
    %790 = vmatpush.bf16.msra.mxu0 %v675
    %791 = vmatpush.bf16.msra.mxu0 %v674
    %792 = vmatpush.bf16.msra.mxu0 %v673
    %793 = vmatpush.bf16.msra.mxu0 %v672
    %794 = vmatpush.bf16.msra.mxu0 %v671
    %795 = vmatmul.bf16.gmra.mxu0 %v349
    %v796 = vpop.f32.mrf.mxu0
    %v797 = vadd.f32 %v784, %v796
    %v798 = vpop.f32.mrf.mxu0
    %799 = vdwg.mxu0
    %800 = vmatpush.bf16.msra.mxu0 %v686
    %801 = vmatpush.bf16.msra.mxu0 %v685
    %802 = vmatpush.bf16.msra.mxu0 %v684
    %803 = vmatpush.bf16.msra.mxu0 %v683
    %804 = vmatpush.bf16.msra.mxu0 %v682
    %805 = vmatpush.bf16.msra.mxu0 %v681
    %806 = vmatpush.bf16.msra.mxu0 %v680
    %807 = vmatpush.bf16.msra.mxu0 %v679
    %808 = vmatmul.bf16.gmra.mxu0 %v350
    %v809 = vpop.f32.mrf.mxu0
    %v810 = vadd.f32 %v797, %v809
    %v811 = vpop.f32.mrf.mxu0
    %812 = vdwg.mxu0
    %v813 = vpack.c.bf16 %v810, %v810
    %v814 = vld [vmem:[#allocation5 + $0x180] sm:$0xf]
    %v815 = vld [vmem:[#allocation5 + $0x184] sm:$0xf]
    %v816 = vld [vmem:[#allocation5 + $0x188] sm:$0xf]
    %v817 = vld [vmem:[#allocation5 + $0x18c] sm:$0xf]
    %v818 = vld [vmem:[#allocation5 + $0x190] sm:$0xf]
    %v819 = vld [vmem:[#allocation5 + $0x194] sm:$0xf]
    %v820 = vld [vmem:[#allocation5 + $0x198] sm:$0xf]
    %v821 = vld [vmem:[#allocation5 + $0x19c] sm:$0xf]
    %v822 = vld [vmem:[#allocation5 + $0x1a0] sm:$0x1]
    %v823 = vunpack.c.l.bf16 %v822
    %v824 = vperm.slane %v823, 0
    %v833 = vunpack.c.l.b16 %v814
    %v834 = vunpack.c.l.b16 %v815
    %v835 = vunpack.c.l.b16 %v816
    %v836 = vunpack.c.l.b16 %v817
    %v837 = vunpack.c.l.b16 %v818
    %v838 = vunpack.c.l.b16 %v819
    %v839 = vunpack.c.l.b16 %v820
    %v840 = vunpack.c.l.b16 %v821
    %v841 = vpack.c.b16 %v834, %v833
    %v842 = vpack.c.b16 %v836, %v835
    %v843 = vpack.c.b16 %v838, %v837
    %v844 = vpack.c.b16 %v840, %v839
    %v850 = vsel %vm244, %v813, 0
    %852 = vmatpush.bf16.msra.mxu0 0
    %853 = vmatpush.bf16.msra.mxu0 0
    %854 = vmatpush.bf16.msra.mxu0 0
    %855 = vmatpush.bf16.msra.mxu0 0
    %856 = vmatpush.bf16.msra.mxu0 %v844
    %857 = vmatpush.bf16.msra.mxu0 %v843
    %858 = vmatpush.bf16.msra.mxu0 %v842
    %859 = vmatpush.bf16.msra.mxu0 %v841
    %860 = vmatmul.bf16.gmra.mxu0 %v850
    %v861 = vpop.f32.mrf.mxu0
    %v862 = vadd.f32 %v824, %v861
    %v863 = vpop.f32.mrf.mxu0
    %864 = vdwg.mxu0
    %v865 = vmax.f32 %v862, 0.0
    %v866 = vpack.c.bf16 %v865, %v865
    %v867 = vld [vmem:[#allocation5 + $0x1a8] sm:$0xf]
    %v868 = vld [vmem:[#allocation5 + $0x1b0] sm:$0x1]
    %v869 = vunpack.c.l.bf16 %v868
    %v870 = vperm.slane %v869, 0
    %vm871 = vcmask 64512
    %v873 = vsel %vm871, %v866, 0
    %vm875 = vcmask 1043456
    %v877 = vsel %vm875, %v867, 0
    %879 = vmatpush.bf16.msra.mxu0 0
    %880 = vmatpush.bf16.msra.mxu0 0
    %881 = vmatpush.bf16.msra.mxu0 0
    %882 = vmatpush.bf16.msra.mxu0 0
    %883 = vmatpush.bf16.msra.mxu0 0
    %884 = vmatpush.bf16.msra.mxu0 0
    %885 = vmatpush.bf16.msra.mxu0 0
    %886 = vmatpush.bf16.msra.mxu0 %v877
    %887 = vmatmul.bf16.gmra.mxu0 %v873
    %v888 = vpop.f32.mrf.mxu0
    %v889 = vadd.f32 %v870, %v888
    %v890 = vpop.f32.mrf.mxu0
    %891 = vdwg.mxu0
    %v892 = vxor.u32 %v889, 2147483648
    %v893 = vmul.f32 %v892, 1.442695
    %v894 = vpow.pop %v893
    %v895 = vadd.f32 %v894, 1.0
    %v896 = vrcp.pop %v895
    %v897 = vmul.f32 %v895, %v896
    %v898 = vsub.f32 1.0, %v897
    %v899 = vmul.f32 %v896, %v898
    %v900 = vadd.f32 %v896, %v899
    %vm901 = vweird.f32 %v895
    %vm902 = vweird.f32 %v896
    %vm903 = vmor %vm901, %vm902
    %v904 = vsel %vm903, %v896, %v900
    %v905 = vand.u32 2147483647, %v895
    %vm906 = vcmp.eq.f32.partialorder %v905, 8.507059e+37
    %v907 = vand.u32 %v895, 2147483648
    %v908 = vor.u32 1.1754944e-38, %v907
    %v909 = vsel %vm906, %v908, %v904
    %v910 = vmul.f32 1.0, %v909
    %912 = vrot.lane.b32.xlu0 %v910, 16
    %v913 = vpop.permute.xlu0 %912
    %915 = vrot.lane.b32.xlu0 %v910, 32
    %v916 = vpop.permute.xlu0 %915
    %918 = vrot.lane.b32.xlu0 %v910, 48
    %v919 = vpop.permute.xlu0 %918
    %vm921 = vcmask 130048
    %v922 = vsel %vm921, %v910, %v913
    %vm923 = vcmask 261120
    %v924 = vsel %vm923, %v922, %v916
    %vm925 = vcmask 392192
    %v926 = vsel %vm925, %v924, %v919
    %v927 = vmul.f32 %v810, %v926
    %v928 = vpack.c.bf16 %v927, %v927
    %v929 = vld [vmem:[#allocation5 + $0x1b8] sm:$0xf]
    %v930 = vld [vmem:[#allocation5 + $0x1bc] sm:$0xf]
    %v931 = vld [vmem:[#allocation5 + $0x1c0] sm:$0xf]
    %v932 = vld [vmem:[#allocation5 + $0x1c4] sm:$0xf]
    %v933 = vld [vmem:[#allocation5 + $0x1c8] sm:$0xf]
    %v934 = vld [vmem:[#allocation5 + $0x1cc] sm:$0xf]
    %v935 = vld [vmem:[#allocation5 + $0x1d0] sm:$0xf]
    %v936 = vld [vmem:[#allocation5 + $0x1d4] sm:$0xf]
    %v937 = vld [vmem:[#allocation5 + $0x1d8] sm:$0x1]
    %v938 = vunpack.c.l.bf16 %v937
    %v939 = vperm.slane %v938, 0
    %v948 = vunpack.c.l.b16 %v929
    %v949 = vunpack.c.l.b16 %v930
    %v950 = vunpack.c.l.b16 %v931
    %v951 = vunpack.c.l.b16 %v932
    %v952 = vunpack.c.l.b16 %v933
    %v953 = vunpack.c.l.b16 %v934
    %v954 = vunpack.c.l.b16 %v935
    %v955 = vunpack.c.l.b16 %v936
    %v956 = vpack.c.b16 %v949, %v948
    %v957 = vpack.c.b16 %v951, %v950
    %v958 = vpack.c.b16 %v953, %v952
    %v959 = vpack.c.b16 %v955, %v954
    %v965 = vsel %vm244, %v928, 0
    %967 = vmatpush.bf16.msra.mxu0 0
    %968 = vmatpush.bf16.msra.mxu0 0
    %969 = vmatpush.bf16.msra.mxu0 0
    %970 = vmatpush.bf16.msra.mxu0 0
    %971 = vmatpush.bf16.msra.mxu0 %v959
    %972 = vmatpush.bf16.msra.mxu0 %v958
    %973 = vmatpush.bf16.msra.mxu0 %v957
    %974 = vmatpush.bf16.msra.mxu0 %v956
    %975 = vmatmul.bf16.gmra.mxu0 %v965
    %v976 = vpop.f32.mrf.mxu0
    %v977 = vadd.f32 %v939, %v976
    %v978 = vpop.f32.mrf.mxu0
    %979 = vdwg.mxu0
    %v980 = vmax.f32 %v977, 0.0
    %v981 = vpack.c.bf16 %v980, %v980
    %v982 = vld [vmem:[#allocation5 + $0x1e0] sm:$0x3]
    %v983 = vld [vmem:[#allocation5 + $0x1e8] sm:$0x1]
    %v984 = vunpack.c.l.bf16 %v983
    %v985 = vperm.slane %v984, 0
    %vm986 = vcmask 31744
    %v988 = vsel %vm986, %v981, 0
    %vm990 = vcmask 1041408
    %v992 = vsel %vm990, %v982, 0
    %994 = vmatpush.bf16.msra.mxu0 0
    %995 = vmatpush.bf16.msra.mxu0 0
    %996 = vmatpush.bf16.msra.mxu0 0
    %997 = vmatpush.bf16.msra.mxu0 0
    %998 = vmatpush.bf16.msra.mxu0 0
    %999 = vmatpush.bf16.msra.mxu0 0
    %1000 = vmatpush.bf16.msra.mxu0 0
    %1001 = vmatpush.bf16.msra.mxu0 %v992
    %1002 = vmatmul.bf16.gmra.mxu0 %v988
    %v1003 = vpop.f32.mrf.mxu0
    %v1004 = vadd.f32 %v985, %v1003
    %v1005 = vpop.f32.mrf.mxu0
    %1006 = vdwg.mxu0
    %v1007 = vmax.f32 %v1004, 0.0
    %v1008 = vpack.c.bf16 %v1007, %v1007
    %v1009 = vld [vmem:[#allocation5 + $0x1f0] sm:$0x3]
    %v1010 = vld [vmem:[#allocation5 + $0x1f8] sm:$0x1]
    %v1011 = vunpack.c.l.bf16 %v1010
    %v1012 = vperm.slane %v1011, 0
    %v1014 = vsel %vm986, %v1008, 0
    %v1017 = vsel %vm990, %v1009, 0
    %1019 = vmatpush.bf16.msra.mxu0 0
    %1020 = vmatpush.bf16.msra.mxu0 0
    %1021 = vmatpush.bf16.msra.mxu0 0
    %1022 = vmatpush.bf16.msra.mxu0 0
    %1023 = vmatpush.bf16.msra.mxu0 0
    %1024 = vmatpush.bf16.msra.mxu0 0
    %1025 = vmatpush.bf16.msra.mxu0 0
    %1026 = vmatpush.bf16.msra.mxu0 %v1017
    %1027 = vmatmul.bf16.gmra.mxu0 %v1014
    %v1028 = vpop.f32.mrf.mxu0
    %v1029 = vadd.f32 %v1012, %v1028
    %v1030 = vpop.f32.mrf.mxu0
    %1031 = vdwg.mxu0
    %1032 = vst [vmem:[#allocation7] sm:$0x3] %v1029
    // Predicated region
    $region22: #{forward.1} parent=1 // pred_check
      _
    $region23: #{forward.1} parent=1 // pred_check_branch
      %1034 = sbr.rel (0) target = $region25
    $region24: #{forward.1} parent=1 // pred_region
      %1036 = vsyncadd [#allocation4], 0
      %s1038 = sshll.u32 [#allocation7], 4
      %s1039 = int_to_ptr.vmem [resolvable:$true] %s1038
      %s1040 = sshll.u32 %s3, 4
      %s1041 = int_to_ptr.hbm [resolvable:$true] %s1040
      %1043 = dma.vmem_to_hbm [thread:$0]  %s1039, 32, %s1041, [#allocation4]
    $region25: #{forward.1} parent=1 // pred_fallthru
      _
    // Predicated region
    $region26: #{forward.1} parent=1 // pred_check
      _
    $region27: #{forward.1} parent=1 // pred_check_branch
      %1045 = sbr.rel (0) target = $region29
    $region28: #{forward.1} parent=1 // pred_region
      %1047 = dma.done [#allocation4], 32
    $region29: #{forward.1} parent=1 // pred_fallthru
      _
    %1048 = vsyncpa [#allocation3], 1
    %1049 = vsyncpa [#allocation6], 1
    %1050 = vsyncpa [#allocation4], 1

</llo_original>
